<compile_context>
chip_gen: v7x
topology: tpu7x:2x2x1
jax: 0.10.0
libtpu: 0.0.40
codegen_flags: <defaults>
</compile_context>

<pallas_src>
import functools

import jax
import jax.numpy as jnp
import numpy as np
from jax.experimental import pallas as pl
from jax.experimental.pallas import tpu as pltpu


# --------------------------- Pallas kernel ---------------------------

def _fused_dwsep_kernel(xp_ref, wft_ref, bf_ref, out_ref, *, ksize, th, wout):
    """One (batch, row-tile) step of the fused depthwise-separable conv.

    xp_ref : (1, Hp, Wp, Cin)    zero-padded NHWC image (same block for every row tile)
    wft_ref: (Cout, K*K*Cin)     fused (depthwise x pointwise) weight, pre-transposed
    bf_ref : (Cout, 1)           fused bias
    out_ref: (1, Cout, TH*Wout)  channels-first, lane-dense output tile
    """
    cin = xp_ref.shape[-1]
    m = th * wout
    r0 = pl.multiple_of(pl.program_id(1) * th, th)   # top output row of this tile

    # One dynamic-start load of the halo'd row band for this tile.
    band = xp_ref[0, pl.ds(r0, th + ksize - 1), :, :]          # (TH+K-1, Wp, Cin)

    # Build the im2col tile from static shifted windows (no HBM im2col).
    # Tap ordering (kh outer, kw inner, c innermost) matches wft's row ordering.
    taps = []
    for kh in range(ksize):
        for kw in range(ksize):
            taps.append(band[kh:kh + th, kw:kw + wout, :])     # (TH, Wout, Cin)
    col = jnp.concatenate(taps, axis=-1).reshape(m, ksize * ksize * cin)

    # Single MXU matmul producing the output directly channels-first: (Cout, M).
    # (At small Cout/K the MXU is underutilized; the kernel is overhead/DMA-bound,
    # which the single-call fusion addresses.)
    y = jax.lax.dot_general(
        wft_ref[...], col,
        dimension_numbers=(((1,), (1,)), ((), ())),
        preferred_element_type=jnp.float32)
    y = y + bf_ref[...]
    out_ref[0] = y.astype(out_ref.dtype)


# --------------------------- wrapper ---------------------------

def depthwise_separable_conv(x_nchw, wft, bf, *, ksize, padding, row_tile):
    """x_nchw: (N, Cin, H, W) float32 -> (N, Cout, Hout, Wout) float32."""
    n, cin, h, w = x_nchw.shape
    cout = wft.shape[0]
    hout = h + 2 * padding - ksize + 1
    wout = w + 2 * padding - ksize + 1
    assert hout % row_tile == 0, (hout, row_tile)

    # NHWC + zero pad: one cheap XLA op; everything else happens in the kernel.
    xp = jnp.pad(jnp.transpose(x_nchw, (0, 2, 3, 1)),
                 ((0, 0), (padding, padding), (padding, padding), (0, 0)))
    hp, wp = h + 2 * padding, w + 2 * padding

    m_tile = row_tile * wout
    n_row_tiles = hout // row_tile

    kernel = functools.partial(_fused_dwsep_kernel, ksize=ksize, th=row_tile, wout=wout)

    # Bound the per-step working set explicitly (double-buffered inputs included).
    in_bytes = hp * wp * cin * 4
    out_bytes = cout * m_tile * 4
    w_bytes = (wft.size + bf.size) * 4
    vmem_limit = int(min(max(4 * (in_bytes + out_bytes + w_bytes), 8 * 1024 * 1024),
                         32 * 1024 * 1024))

    out = pl.pallas_call(
        kernel,
        out_shape=jax.ShapeDtypeStruct((n, cout, hout * wout), jnp.float32),
        grid=(n, n_row_tiles),
        in_specs=[
            pl.BlockSpec((1, hp, wp, cin), lambda b, r: (b, 0, 0, 0)),
            pl.BlockSpec((cout, wft.shape[1]), lambda b, r: (0, 0)),
            pl.BlockSpec((cout, 1), lambda b, r: (0, 0)),
        ],
        out_specs=pl.BlockSpec((1, cout, m_tile), lambda b, r: (b, 0, r)),
        compiler_params=pltpu.CompilerParams(
            dimension_semantics=("parallel", "parallel"),
            vmem_limit_bytes=vmem_limit),
    )(xp, wft, bf)

    return out.reshape(n, cout, hout, wout)


# --------------------------- host-side constant weight fusion ---------------------------

def fuse_params(w_dw, b_dw, w_pw, b_pw, *, in_channels, kernels_per_layer):
    """Fold torch-layout depthwise (Cin*kpl,1,K,K) + pointwise (Cout,Cin*kpl,1,1)
    weights into a single KxK conv: wft (Cout, K*K*Cin), bf (Cout, 1)."""
    k = w_dw.shape[-1]
    cout = w_pw.shape[0]
    dw = w_dw[:, 0].reshape(in_channels, kernels_per_layer, k, k)        # (Cin,kpl,K,K)
    pw = w_pw[:, :, 0, 0].reshape(cout, in_channels, kernels_per_layer)  # (Cout,Cin,kpl)
    # fused[kh,kw,c,o] = sum_j dw[c,j,kh,kw] * pw[o,c,j]; rows ordered (kh,kw,c).
    wf = jnp.einsum("cjhw,ocj->hwco", dw, pw).reshape(k * k * in_channels, cout)
    bf = (w_pw[:, :, 0, 0] @ b_dw + b_pw).reshape(cout, 1)
    return wf.T, bf


# --------------------------- pure-JAX reference ---------------------------

def reference_forward(x, w_dw, b_dw, w_pw, b_pw, *, padding, groups):
    y = jax.lax.conv_general_dilated(
        x, w_dw, (1, 1), ((padding, padding), (padding, padding)),
        dimension_numbers=("NCHW", "OIHW", "NCHW"), feature_group_count=groups)
    y = y + b_dw[None, :, None, None]
    y = jax.lax.conv_general_dilated(
        y, w_pw, (1, 1), ((0, 0), (0, 0)),
        dimension_numbers=("NCHW", "OIHW", "NCHW"))
    return y + b_pw[None, :, None, None]


# --------------------------- main ---------------------------

if __name__ == "__main__":
    # DepthwiseSeparableConv(in_channels=8, output_channels=16, kernel_size=3,
    #                        padding=1, kernels_per_layer=2)
    in_channels, out_channels = 8, 16
    kernel_size, padding, kpl = 3, 1, 2
    N, H, W = 2, 16, 16

    key = jax.random.PRNGKey(0)
    k0, k1, k2, k3, k4 = jax.random.split(key, 5)
    w_dw = 0.1 * jax.random.normal(k0, (in_channels * kpl, 1, kernel_size, kernel_size), jnp.float32)
    b_dw = 0.1 * jax.random.normal(k1, (in_channels * kpl,), jnp.float32)
    w_pw = 0.1 * jax.random.normal(k2, (out_channels, in_channels * kpl, 1, 1), jnp.float32)
    b_pw = 0.1 * jax.random.normal(k3, (out_channels,), jnp.float32)
    x = jax.random.normal(k4, (N, in_channels, H, W), jnp.float32)

    # Fold depthwise+pointwise once, outside the forward (constant transform).
    wft, bf = fuse_params(w_dw, b_dw, w_pw, b_pw,
                          in_channels=in_channels, kernels_per_layer=kpl)

    hout = H + 2 * padding - kernel_size + 1
    wout = W + 2 * padding - kernel_size + 1
    # Row tile: TH*Wout is a multiple of 128 (lane-dense stores) and there are
    # >= 2 row tiles so the (batch, rows) grid pipelines / splits across cores.
    row_tile = 8
    assert hout % row_tile == 0 and (row_tile * wout) % 128 == 0

    fwd = jax.jit(functools.partial(depthwise_separable_conv,
                                    ksize=kernel_size, padding=padding,
                                    row_tile=row_tile))
    out = jax.block_until_ready(fwd(x, wft, bf))

    ref = jax.block_until_ready(reference_forward(
        x, w_dw, b_dw, w_pw, b_pw, padding=padding, groups=in_channels))

    assert out.shape == (N, out_channels, hout, wout), out.shape
    np.testing.assert_allclose(np.asarray(out), np.asarray(ref), rtol=1e-4, atol=1e-5)
    print("KERNEL_OK")
</pallas_src>

<mosaic_0001>
module attributes {stable_mosaic.version = 11 : i64} {
  func.func @_fused_dwsep_kernel(%arg0: i32, %arg1: i32, %arg2: memref<1x18x18x8xf32, #tpu.memory_space<vmem>>, %arg3: memref<16x72xf32, #tpu.memory_space<vmem>>, %arg4: memref<16x1xf32, #tpu.memory_space<vmem>>, %arg5: memref<1x16x128xf32, #tpu.memory_space<vmem>>) attributes {dimension_semantics = [#tpu.dimension_semantics<parallel>, #tpu.dimension_semantics<parallel>], iteration_bounds = array<i64: 2, 2>, scalar_prefetch = 0 : i64, scratch_operands = 0 : i64, tpu.core_type = #tpu.core_type<tc>, window_params = [{transform_indices = @transform_0, window_bounds = array<i64: 1, 18, 18, 8>}, {pipeline_mode = #tpu.pipeline_mode<synchronous>, transform_indices = @transform_1, window_bounds = array<i64: 16, 72>}, {pipeline_mode = #tpu.pipeline_mode<synchronous>, transform_indices = @transform_2, window_bounds = array<i64: 16, 1>}, {transform_indices = @transform_3, window_bounds = array<i64: 1, 16, 128>}]} {
    %c8_i32 = arith.constant 8 : i32
    %0 = arith.muli %arg1, %c8_i32 : i32
    %1 = tpu.assume_multiple %0, 8 : i32
    %c0 = arith.constant 0 : index
    %2 = arith.index_cast %1 : i32 to index
    %c0_0 = arith.constant 0 : index
    %c0_1 = arith.constant 0 : index
    %3 = vector.load %arg2[%c0, %2, %c0_0, %c0_1] : memref<1x18x18x8xf32, #tpu.memory_space<vmem>>, vector<1x10x18x8xf32>
    %4 = vector.shape_cast %3 : vector<1x10x18x8xf32> to vector<10x18x8xf32>
    %5 = vector.extract_strided_slice %4 {offsets = [0, 0, 0], sizes = [8, 16, 8], strides = [1, 1, 1]} : vector<10x18x8xf32> to vector<8x16x8xf32>
    %6 = vector.extract_strided_slice %4 {offsets = [0, 1, 0], sizes = [8, 16, 8], strides = [1, 1, 1]} : vector<10x18x8xf32> to vector<8x16x8xf32>
    %7 = vector.extract_strided_slice %4 {offsets = [0, 2, 0], sizes = [8, 16, 8], strides = [1, 1, 1]} : vector<10x18x8xf32> to vector<8x16x8xf32>
    %8 = vector.extract_strided_slice %4 {offsets = [1, 0, 0], sizes = [8, 16, 8], strides = [1, 1, 1]} : vector<10x18x8xf32> to vector<8x16x8xf32>
    %9 = vector.extract_strided_slice %4 {offsets = [1, 1, 0], sizes = [8, 16, 8], strides = [1, 1, 1]} : vector<10x18x8xf32> to vector<8x16x8xf32>
    %10 = vector.extract_strided_slice %4 {offsets = [1, 2, 0], sizes = [8, 16, 8], strides = [1, 1, 1]} : vector<10x18x8xf32> to vector<8x16x8xf32>
    %11 = vector.extract_strided_slice %4 {offsets = [2, 0, 0], sizes = [8, 16, 8], strides = [1, 1, 1]} : vector<10x18x8xf32> to vector<8x16x8xf32>
    %12 = vector.extract_strided_slice %4 {offsets = [2, 1, 0], sizes = [8, 16, 8], strides = [1, 1, 1]} : vector<10x18x8xf32> to vector<8x16x8xf32>
    %13 = vector.extract_strided_slice %4 {offsets = [2, 2, 0], sizes = [8, 16, 8], strides = [1, 1, 1]} : vector<10x18x8xf32> to vector<8x16x8xf32>
    %14 = tpu.concatenate %5, %6, %7, %8, %9, %10, %11, %12, %13 in 2 : vector<8x16x8xf32>, vector<8x16x8xf32>, vector<8x16x8xf32>, vector<8x16x8xf32>, vector<8x16x8xf32>, vector<8x16x8xf32>, vector<8x16x8xf32>, vector<8x16x8xf32>, vector<8x16x8xf32> -> vector<8x16x72xf32>
    %15 = vector.shape_cast %14 : vector<8x16x72xf32> to vector<128x72xf32>
    %c0_2 = arith.constant 0 : index
    %c0_3 = arith.constant 0 : index
    %16 = vector.load %arg3[%c0_2, %c0_3] : memref<16x72xf32, #tpu.memory_space<vmem>>, vector<16x72xf32>
    %cst = arith.constant dense<0.000000e+00> : vector<16x128xf32>
    %17 = tpu.matmul %16, %15, %cst {dimension_numbers = #tpu.dot_dimension_numbers<[1], [1], [0], [0], [0, 0, 1, 0], [], []>} : vector<16x72xf32>, vector<128x72xf32>, vector<16x128xf32> -> vector<16x128xf32>
    %c0_4 = arith.constant 0 : index
    %c0_5 = arith.constant 0 : index
    %18 = vector.load %arg4[%c0_4, %c0_5] : memref<16x1xf32, #tpu.memory_space<vmem>>, vector<16x1xf32>
    %19 = vector.broadcast %18 : vector<16x1xf32> to vector<16x128xf32>
    %20 = arith.addf %17, %19 : vector<16x128xf32>
    %c0_6 = arith.constant 0 : index
    %c0_7 = arith.constant 0 : index
    %c0_8 = arith.constant 0 : index
    %21 = vector.load %arg5[%c0_6, %c0_7, %c0_8] : memref<1x16x128xf32, #tpu.memory_space<vmem>>, vector<1x16x128xf32>
    %22 = vector.shape_cast %21 : vector<1x16x128xf32> to vector<16x128xf32>
    %23 = vector.shape_cast %20 : vector<16x128xf32> to vector<1x16x128xf32>
    tpu.vector_store %arg5[%c0_6, %c0_7, %c0_8], %23 {strides = array<i32>} : memref<1x16x128xf32, #tpu.memory_space<vmem>>, vector<1x16x128xf32>,
    return
  }
  func.func @transform_0(%arg0: i32, %arg1: i32) -> (i32, i32, i32, i32) {
    %c0_i32 = arith.constant 0 : i32
    %c0_i32_0 = arith.constant 0 : i32
    %c0_i32_1 = arith.constant 0 : i32
    %c0_i32_2 = arith.constant 0 : i32
    return %arg0, %c0_i32, %c0_i32_0, %c0_i32_1 : i32, i32, i32, i32
  }
  func.func @transform_1(%arg0: i32, %arg1: i32) -> (i32, i32) {
    %c0_i32 = arith.constant 0 : i32
    %c0_i32_0 = arith.constant 0 : i32
    %c0_i32_1 = arith.constant 0 : i32
    return %c0_i32, %c0_i32_0 : i32, i32
  }
  func.func @transform_2(%arg0: i32, %arg1: i32) -> (i32, i32) {
    %c0_i32 = arith.constant 0 : i32
    %c0_i32_0 = arith.constant 0 : i32
    %c0_i32_1 = arith.constant 0 : i32
    return %c0_i32, %c0_i32_0 : i32, i32
  }
  func.func @transform_3(%arg0: i32, %arg1: i32) -> (i32, i32, i32) {
    %c0_i32 = arith.constant 0 : i32
    %c0_i32_0 = arith.constant 0 : i32
    return %arg0, %c0_i32, %arg1 : i32, i32, i32
  }
}

</mosaic_0001>

<llo_original>
// kernel: depthwise_separable_conv.1
$region0: #{depthwise_separable_conv.1}
  #allocation0 [shape = 'u32[]', space=smem, size = 0x4, offset = 0x4, fixed_abs, tag = 'smem constant byte address 0x4 - core index']
  #allocation1 [shape = 'u32[144,128]{1,0:T(1,128)}', space=vmem, size = 0x12000, scoped, tag = 'internal scratch']
  %s0 = inlined_call_operand.vmem [shape: f32[2,18,18,8], index: 0, kind: input, shape index: {}]
  %s1 = inlined_call_operand.vmem [shape: f32[16,72], index: 1, kind: input, shape index: {}]
  %s2 = inlined_call_operand.vmem [shape: f32[16,1], index: 2, kind: input, shape index: {}]
  %s3 = inlined_call_operand.vmem [shape: f32[2,16,256], index: 3, kind: output, shape index: {}]
  %s4 = sld [smem:[#allocation0]]
  $region79: #{depthwise_separable_conv.1} parent=0
    _
  %s6 = ssub.s32 1, %s4
  %s7 = scalar_select 0, %s6, %s4
  $region1: #{depthwise_separable_conv.1} parent=0
    #allocation2 [shape = 'u8[16384]{0}', space=vmem, size = 0x4000, scoped, tag = 'output window, operand 0']
    loop: start=0, step=1, limit=6
    $region2: #{depthwise_separable_conv.1} parent=1 // loop_pre_header
      _
    $region3: #{depthwise_separable_conv.1} parent=1 // loop_header
      %s9 = sphi 0, %s13
      %p10 = scmp.ge.s32.totalorder %s9, 6
      %s16 = sphi 0, %s28
      %s17 = sphi 0, %s24
      %s18 = sphi 0, %s16
      %s19 = sphi 0, %s17
      %s20 = sphi 0, %s18
      %s21 = sphi 0, %s19
      %s31 = sphi 0, %s33
      %s34 = sphi 0, %s31
      %s35 = sphi 0, %s34
      %s51 = sphi 0, %s35
      %s55 = sphi 0, %s55
      %s57 = sphi 0, %s55
      %s58 = sphi 0, %s57
      %s72 = sphi 0, %s58
      %s76 = sphi 0, %s76
      %s78 = sphi 0, %s76
      %s79 = sphi 0, %s78
      %s93 = sphi 0, %s79
      %s101 = sphi 0, %s103
      %s104 = sphi 0, %s101
      %s105 = sphi 0, %s104
      %s121 = sphi 0, %s105
    $region4: #{depthwise_separable_conv.1} parent=1 // loop_header_branch
      %12 = sbr.rel (%p10) target = $region8
    $region5: #{depthwise_separable_conv.1} parent=1 // loop_body
      %s14 = ssub.s32 %s9, 1
      %s15 = ssub.s32 %s9, 2
      %s22 = sadd.s32 1, %s17
      %p23 = scmp.ge.s32.totalorder %s22, 2
      %s24 = scalar_select %p23, 0, %s22
      %s25 = sadd.s32 1, %s16
      %s26 = scalar_select %p23, %s25, %s16
      %p27 = scmp.ge.s32.totalorder %s26, 2
      %s28 = scalar_select %p27, 0, %s26
      %s29 = ssub.s32 %s16, %s28
      %p30 = scmp.eq.s32.totalorder %s29, 0
      %s32 = sadd.s32 %s31, 1
      %s33 = scalar_select %p30, %s31, %s32
      %p36 = pneg %p30
      %p37 = scmp.eq.s32.totalorder %s9, 3
      %p38 = por %p36, %p37
      %p39 = scmp.ne.s32.totalorder %s31, %s34
      %p40 = scmp.eq.s32.totalorder %s9, 0
      %p41 = por %p39, %p40
      %p42 = scmp.ne.s32.totalorder %s31, %s34
      %p43 = scmp.eq.s32.totalorder %s14, 3
      %p44 = por %p42, %p43
      %p45 = scmp.ne.s32.totalorder %s34, %s35
      %p46 = scmp.eq.s32.totalorder %s14, 0
      %p47 = por %p45, %p46
      %p48 = scmp.ne.s32.totalorder %s34, %s35
      %p49 = scmp.eq.s32.totalorder %s15, 3
      %p50 = por %p48, %p49
      %p52 = scmp.ne.s32.totalorder %s35, %s51
      %p53 = scmp.eq.s32.totalorder %s15, 0
      %p54 = por %p52, %p53
      %s56 = sadd.s32 %s55, 1
      %p59 = scmp.eq.s32.totalorder %s9, 3
      %p60 = scmp.ne.s32.totalorder %s55, %s57
      %p61 = scmp.eq.s32.totalorder %s9, 0
      %p62 = por %p60, %p61
      %p63 = scmp.ne.s32.totalorder %s55, %s57
      %p64 = scmp.eq.s32.totalorder %s14, 3
      %p65 = por %p63, %p64
      %p66 = scmp.ne.s32.totalorder %s57, %s58
      %p67 = scmp.eq.s32.totalorder %s14, 0
      %p68 = por %p66, %p67
      %p69 = scmp.ne.s32.totalorder %s57, %s58
      %p70 = scmp.eq.s32.totalorder %s15, 3
      %p71 = por %p69, %p70
      %p73 = scmp.ne.s32.totalorder %s58, %s72
      %p74 = scmp.eq.s32.totalorder %s15, 0
      %p75 = por %p73, %p74
      %s77 = sadd.s32 %s76, 1
      %p80 = scmp.eq.s32.totalorder %s9, 3
      %p81 = scmp.ne.s32.totalorder %s76, %s78
      %p82 = scmp.eq.s32.totalorder %s9, 0
      %p83 = por %p81, %p82
      %p84 = scmp.ne.s32.totalorder %s76, %s78
      %p85 = scmp.eq.s32.totalorder %s14, 3
      %p86 = por %p84, %p85
      %p87 = scmp.ne.s32.totalorder %s78, %s79
      %p88 = scmp.eq.s32.totalorder %s14, 0
      %p89 = por %p87, %p88
      %p90 = scmp.ne.s32.totalorder %s78, %s79
      %p91 = scmp.eq.s32.totalorder %s15, 3
      %p92 = por %p90, %p91
      %p94 = scmp.ne.s32.totalorder %s79, %s93
      %p95 = scmp.eq.s32.totalorder %s15, 0
      %p96 = por %p94, %p95
      %s97 = ssub.s32 %s16, %s28
      %s98 = ssub.s32 %s17, %s24
      %s99 = sor.u32 %s97, %s98
      %p100 = scmp.eq.s32.totalorder %s99, 0
      %s102 = sadd.s32 %s101, 1
      %s103 = scalar_select %p100, %s101, %s102
      %p106 = pneg %p100
      %p107 = scmp.eq.s32.totalorder %s9, 3
      %p108 = por %p106, %p107
      %p109 = scmp.ne.s32.totalorder %s101, %s104
      %p110 = scmp.eq.s32.totalorder %s9, 0
      %p111 = por %p109, %p110
      %p112 = scmp.ne.s32.totalorder %s101, %s104
      %p113 = scmp.eq.s32.totalorder %s14, 3
      %p114 = por %p112, %p113
      %p115 = scmp.ne.s32.totalorder %s104, %s105
      %p116 = scmp.eq.s32.totalorder %s14, 0
      %p117 = por %p115, %p116
      %p118 = scmp.ne.s32.totalorder %s104, %s105
      %p119 = scmp.eq.s32.totalorder %s15, 3
      %p120 = por %p118, %p119
      %p122 = scmp.ne.s32.totalorder %s105, %s121
      %p123 = scmp.eq.s32.totalorder %s15, 0
      %p124 = por %p122, %p123
      %p125 = scmp.le.s32.totalorder 1, %s9
      %p126 = scmp.lt.s32.totalorder %s9, 5
      %p127 = pnand %p125, %p126
      %p128 = pneg %p127
      // Predicated region
      $region9: #{depthwise_separable_conv.1} parent=5 // pred_check
        _
      $region10: #{depthwise_separable_conv.1} parent=5 // pred_check_branch
        %130 = sbr.rel (%p127) target = $region12
      $region11: #{depthwise_separable_conv.1} parent=5 // pred_region
        %s131 = ssub.s32 %s9, 1
        // Predicated region
        $region13: #{depthwise_separable_conv.1} parent=11 // pred_check
          %p132 = pneg %p68
        $region14: #{depthwise_separable_conv.1} parent=11 // pred_check_branch
          %134 = sbr.rel (%p132) target = $region16
        $region15: #{depthwise_separable_conv.1} parent=11 // pred_region
          _
        $region16: #{depthwise_separable_conv.1} parent=11 // pred_fallthru
          _
        // Predicated region
        $region17: #{depthwise_separable_conv.1} parent=11 // pred_check
          %p135 = pneg %p89
        $region18: #{depthwise_separable_conv.1} parent=11 // pred_check_branch
          %137 = sbr.rel (%p135) target = $region20
        $region19: #{depthwise_separable_conv.1} parent=11 // pred_region
          _
        $region20: #{depthwise_separable_conv.1} parent=11 // pred_fallthru
          _
      $region12: #{depthwise_separable_conv.1} parent=5 // pred_fallthru
        _
      %p138 = scmp.lt.s32.totalorder %s9, 4
      // Predicated region
      $region21: #{depthwise_separable_conv.1} parent=5 // pred_check
        %p139 = pneg %p138
      $region22: #{depthwise_separable_conv.1} parent=5 // pred_check_branch
        %141 = sbr.rel (%p139) target = $region24
      $region23: #{depthwise_separable_conv.1} parent=5 // pred_region
        // Predicated region
        $region25: #{depthwise_separable_conv.1} parent=23 // pred_check
          %p142 = pneg %p41
        $region26: #{depthwise_separable_conv.1} parent=23 // pred_check_branch
          %144 = sbr.rel (%p142) target = $region28
        $region27: #{depthwise_separable_conv.1} parent=23 // pred_region
          %p145 = scmp.lt.s32.totalorder %s16, 1
          %s146 = scalar_select %p145, %s16, 1
          %s147 = smul.addr %s146, 54
          %s148 = smul.addr %s147, 8
          %s149 = scalar_lea.vmem %s0, %s148
        $region28: #{depthwise_separable_conv.1} parent=23 // pred_fallthru
          _
      $region24: #{depthwise_separable_conv.1} parent=5 // pred_fallthru
        _
      %p150 = scmp.le.s32.totalorder 1, %s9
      %p151 = scmp.lt.s32.totalorder %s9, 5
      %p152 = pnand %p150, %p151
      %p153 = pneg %p152
      // Predicated region
      $region29: #{depthwise_separable_conv.1} parent=5 // pred_check
        _
      $region30: #{depthwise_separable_conv.1} parent=5 // pred_check_branch
        %155 = sbr.rel (%p152) target = $region32
      $region31: #{depthwise_separable_conv.1} parent=5 // pred_region
        %s156 = ssub.s32 %s9, 1
        %p157 = scmp.lt.s32.totalorder %s18, 1
        %s158 = scalar_select %p157, %s18, 1
        %s159 = smul.addr %s158, 54
        %s160 = smul.addr %s159, 8
        %s161 = scalar_lea.vmem %s0, %s160
        %p162 = pneg %p47
        %p163 = pneg %p44
        %p164 = pneg %p68
        %p165 = pneg %p65
        %p166 = pneg %p89
        %p167 = pneg %p86
        %p168 = pneg %p117
        %p169 = pneg %p114
        %s170 = sand.u32 %s104, 1
        %s171 = sand.u32 %s104, 1
        %s172 = smul.addr %s171, 16
        %s173 = scalar_lea.vmem [#allocation2], %s172
        %p174 = scmp.lt.s32.totalorder %s18, 1
        %s175 = scalar_select %p174, %s18, 1
        %s176 = smul.addr %s175, 54
        %s177 = smul.addr %s176, 8
        %s178 = scalar_lea.vmem %s0, %s177
        %s179 = smul.u32 %s19, 8
        %s180 = smul.u32 %s179, 24
        %s181 = scalar_lea.vmem %s178, %s180
        %v182 = vld [vmem:[%s181] sm:$0xff]
        %v183 = vld [vmem:[%s181 + $0x8] sm:$0xff]
        %v184 = vld [vmem:[%s181 + $0x10] sm:$0x3]
        %v185 = vld [vmem:[%s181 + $0x18] sm:$0xff]
        %v186 = vld [vmem:[%s181 + $0x20] sm:$0xff]
        %v187 = vld [vmem:[%s181 + $0x28] sm:$0x3]
        %v188 = vld [vmem:[%s181 + $0x30] sm:$0xff]
        %v189 = vld [vmem:[%s181 + $0x38] sm:$0xff]
        %v190 = vld [vmem:[%s181 + $0x40] sm:$0x3]
        %v191 = vld [vmem:[%s181 + $0x48] sm:$0xff]
        %v192 = vld [vmem:[%s181 + $0x50] sm:$0xff]
        %v193 = vld [vmem:[%s181 + $0x58] sm:$0x3]
        %v194 = vld [vmem:[%s181 + $0x60] sm:$0xff]
        %v195 = vld [vmem:[%s181 + $0x68] sm:$0xff]
        %v196 = vld [vmem:[%s181 + $0x70] sm:$0x3]
        %v197 = vld [vmem:[%s181 + $0x78] sm:$0xff]
        %v198 = vld [vmem:[%s181 + $0x80] sm:$0xff]
        %v199 = vld [vmem:[%s181 + $0x88] sm:$0x3]
        %v200 = vld [vmem:[%s181 + $0x90] sm:$0xff]
        %v201 = vld [vmem:[%s181 + $0x98] sm:$0xff]
        %v202 = vld [vmem:[%s181 + $0xa0] sm:$0x3]
        %v203 = vld [vmem:[%s181 + $0xa8] sm:$0xff]
        %v204 = vld [vmem:[%s181 + $0xb0] sm:$0xff]
        %v205 = vld [vmem:[%s181 + $0xb8] sm:$0x3]
        %v206 = vld [vmem:[%s181 + $0xc0] sm:$0xff]
        %v207 = vld [vmem:[%s181 + $0xc8] sm:$0xff]
        %v208 = vld [vmem:[%s181 + $0xd0] sm:$0x3]
        %v209 = vld [vmem:[%s181 + $0xd8] sm:$0xff]
        %v210 = vld [vmem:[%s181 + $0xe0] sm:$0xff]
        %v211 = vld [vmem:[%s181 + $0xe8] sm:$0x3]
        %vm236 = vcmask 1046528
        %v237 = vrot.slane %v182, 1
        %v238 = vrot.slane %v183, 1
        %v239 = vsel %vm236, %v237, %v238
        %v240 = vrot.slane %v184, 1
        %v241 = vsel %vm236, %v238, %v240
        %v242 = vrot.slane %v185, 1
        %v243 = vrot.slane %v186, 1
        %v244 = vsel %vm236, %v242, %v243
        %v245 = vrot.slane %v187, 1
        %v246 = vsel %vm236, %v243, %v245
        %v247 = vrot.slane %v188, 1
        %v248 = vrot.slane %v189, 1
        %v249 = vsel %vm236, %v247, %v248
        %v250 = vrot.slane %v190, 1
        %v251 = vsel %vm236, %v248, %v250
        %v252 = vrot.slane %v191, 1
        %v253 = vrot.slane %v192, 1
        %v254 = vsel %vm236, %v252, %v253
        %v255 = vrot.slane %v193, 1
        %v256 = vsel %vm236, %v253, %v255
        %v257 = vrot.slane %v194, 1
        %v258 = vrot.slane %v195, 1
        %v259 = vsel %vm236, %v257, %v258
        %v260 = vrot.slane %v196, 1
        %v261 = vsel %vm236, %v258, %v260
        %v262 = vrot.slane %v197, 1
        %v263 = vrot.slane %v198, 1
        %v264 = vsel %vm236, %v262, %v263
        %v265 = vrot.slane %v199, 1
        %v266 = vsel %vm236, %v263, %v265
        %v267 = vrot.slane %v200, 1
        %v268 = vrot.slane %v201, 1
        %v269 = vsel %vm236, %v267, %v268
        %v270 = vrot.slane %v202, 1
        %v271 = vsel %vm236, %v268, %v270
        %v272 = vrot.slane %v203, 1
        %v273 = vrot.slane %v204, 1
        %v274 = vsel %vm236, %v272, %v273
        %v275 = vrot.slane %v205, 1
        %v276 = vsel %vm236, %v273, %v275
        %277 = vrot.lane.b32.xlu0 %v239, 8
        %v278 = vpop.permute.xlu0 %277
        %279 = vrot.lane.b32.xlu0 %v241, 8
        %v280 = vpop.permute.xlu0 %279
        %281 = vrot.lane.b32.xlu0 %v244, 8
        %v282 = vpop.permute.xlu0 %281
        %283 = vrot.lane.b32.xlu0 %v246, 8
        %v284 = vpop.permute.xlu0 %283
        %285 = vrot.lane.b32.xlu0 %v249, 8
        %v286 = vpop.permute.xlu0 %285
        %287 = vrot.lane.b32.xlu0 %v251, 8
        %v288 = vpop.permute.xlu0 %287
        %289 = vrot.lane.b32.xlu0 %v254, 8
        %v290 = vpop.permute.xlu0 %289
        %291 = vrot.lane.b32.xlu0 %v256, 8
        %v292 = vpop.permute.xlu0 %291
        %293 = vrot.lane.b32.xlu0 %v259, 8
        %v294 = vpop.permute.xlu0 %293
        %295 = vrot.lane.b32.xlu0 %v261, 8
        %v296 = vpop.permute.xlu0 %295
        %297 = vrot.lane.b32.xlu0 %v264, 8
        %v298 = vpop.permute.xlu0 %297
        %299 = vrot.lane.b32.xlu0 %v266, 8
        %v300 = vpop.permute.xlu0 %299
        %301 = vrot.lane.b32.xlu0 %v269, 8
        %v302 = vpop.permute.xlu0 %301
        %303 = vrot.lane.b32.xlu0 %v271, 8
        %v304 = vpop.permute.xlu0 %303
        %305 = vrot.lane.b32.xlu0 %v274, 8
        %v306 = vpop.permute.xlu0 %305
        %307 = vrot.lane.b32.xlu0 %v276, 8
        %v308 = vpop.permute.xlu0 %307
        %vm325 = vcmask 1045504
        %v326 = vrot.slane %v182, 2
        %v327 = vrot.slane %v183, 2
        %v328 = vsel %vm325, %v326, %v327
        %v329 = vrot.slane %v184, 2
        %v330 = vsel %vm325, %v327, %v329
        %v331 = vrot.slane %v185, 2
        %v332 = vrot.slane %v186, 2
        %v333 = vsel %vm325, %v331, %v332
        %v334 = vrot.slane %v187, 2
        %v335 = vsel %vm325, %v332, %v334
        %v336 = vrot.slane %v188, 2
        %v337 = vrot.slane %v189, 2
        %v338 = vsel %vm325, %v336, %v337
        %v339 = vrot.slane %v190, 2
        %v340 = vsel %vm325, %v337, %v339
        %v341 = vrot.slane %v191, 2
        %v342 = vrot.slane %v192, 2
        %v343 = vsel %vm325, %v341, %v342
        %v344 = vrot.slane %v193, 2
        %v345 = vsel %vm325, %v342, %v344
        %v346 = vrot.slane %v194, 2
        %v347 = vrot.slane %v195, 2
        %v348 = vsel %vm325, %v346, %v347
        %v349 = vrot.slane %v196, 2
        %v350 = vsel %vm325, %v347, %v349
        %v351 = vrot.slane %v197, 2
        %v352 = vrot.slane %v198, 2
        %v353 = vsel %vm325, %v351, %v352
        %v354 = vrot.slane %v199, 2
        %v355 = vsel %vm325, %v352, %v354
        %v356 = vrot.slane %v200, 2
        %v357 = vrot.slane %v201, 2
        %v358 = vsel %vm325, %v356, %v357
        %v359 = vrot.slane %v202, 2
        %v360 = vsel %vm325, %v357, %v359
        %v361 = vrot.slane %v203, 2
        %v362 = vrot.slane %v204, 2
        %v363 = vsel %vm325, %v361, %v362
        %v364 = vrot.slane %v205, 2
        %v365 = vsel %vm325, %v362, %v364
        %366 = vrot.lane.b32.xlu0 %v328, 16
        %v367 = vpop.permute.xlu0 %366
        %368 = vrot.lane.b32.xlu0 %v330, 16
        %v369 = vpop.permute.xlu0 %368
        %370 = vrot.lane.b32.xlu0 %v333, 16
        %v371 = vpop.permute.xlu0 %370
        %372 = vrot.lane.b32.xlu0 %v335, 16
        %v373 = vpop.permute.xlu0 %372
        %374 = vrot.lane.b32.xlu0 %v338, 16
        %v375 = vpop.permute.xlu0 %374
        %376 = vrot.lane.b32.xlu0 %v340, 16
        %v377 = vpop.permute.xlu0 %376
        %378 = vrot.lane.b32.xlu0 %v343, 16
        %v379 = vpop.permute.xlu0 %378
        %380 = vrot.lane.b32.xlu0 %v345, 16
        %v381 = vpop.permute.xlu0 %380
        %382 = vrot.lane.b32.xlu0 %v348, 16
        %v383 = vpop.permute.xlu0 %382
        %384 = vrot.lane.b32.xlu0 %v350, 16
        %v385 = vpop.permute.xlu0 %384
        %386 = vrot.lane.b32.xlu0 %v353, 16
        %v387 = vpop.permute.xlu0 %386
        %388 = vrot.lane.b32.xlu0 %v355, 16
        %v389 = vpop.permute.xlu0 %388
        %390 = vrot.lane.b32.xlu0 %v358, 16
        %v391 = vpop.permute.xlu0 %390
        %392 = vrot.lane.b32.xlu0 %v360, 16
        %v393 = vpop.permute.xlu0 %392
        %394 = vrot.lane.b32.xlu0 %v363, 16
        %v395 = vpop.permute.xlu0 %394
        %396 = vrot.lane.b32.xlu0 %v365, 16
        %v397 = vpop.permute.xlu0 %396
        %416 = vrot.lane.b32.xlu0 %v185, 24
        %v417 = vpop.permute.xlu0 %416
        %418 = vrot.lane.b32.xlu0 %v186, 24
        %v419 = vpop.permute.xlu0 %418
        %420 = vrot.lane.b32.xlu0 %v188, 24
        %v421 = vpop.permute.xlu0 %420
        %422 = vrot.lane.b32.xlu0 %v189, 24
        %v423 = vpop.permute.xlu0 %422
        %424 = vrot.lane.b32.xlu0 %v191, 24
        %v425 = vpop.permute.xlu0 %424
        %426 = vrot.lane.b32.xlu0 %v192, 24
        %v427 = vpop.permute.xlu0 %426
        %428 = vrot.lane.b32.xlu0 %v194, 24
        %v429 = vpop.permute.xlu0 %428
        %430 = vrot.lane.b32.xlu0 %v195, 24
        %v431 = vpop.permute.xlu0 %430
        %432 = vrot.lane.b32.xlu0 %v197, 24
        %v433 = vpop.permute.xlu0 %432
        %434 = vrot.lane.b32.xlu0 %v198, 24
        %v435 = vpop.permute.xlu0 %434
        %436 = vrot.lane.b32.xlu0 %v200, 24
        %v437 = vpop.permute.xlu0 %436
        %438 = vrot.lane.b32.xlu0 %v201, 24
        %v439 = vpop.permute.xlu0 %438
        %440 = vrot.lane.b32.xlu0 %v203, 24
        %v441 = vpop.permute.xlu0 %440
        %442 = vrot.lane.b32.xlu0 %v204, 24
        %v443 = vpop.permute.xlu0 %442
        %444 = vrot.lane.b32.xlu0 %v206, 24
        %v445 = vpop.permute.xlu0 %444
        %446 = vrot.lane.b32.xlu0 %v207, 24
        %v447 = vpop.permute.xlu0 %446
        %v465 = vrot.slane %v206, 1
        %v466 = vrot.slane %v207, 1
        %v467 = vsel %vm236, %v465, %v466
        %v468 = vrot.slane %v208, 1
        %v469 = vsel %vm236, %v466, %v468
        %470 = vrot.lane.b32.xlu0 %v244, 32
        %v471 = vpop.permute.xlu0 %470
        %472 = vrot.lane.b32.xlu0 %v246, 32
        %v473 = vpop.permute.xlu0 %472
        %474 = vrot.lane.b32.xlu0 %v249, 32
        %v475 = vpop.permute.xlu0 %474
        %476 = vrot.lane.b32.xlu0 %v251, 32
        %v477 = vpop.permute.xlu0 %476
        %478 = vrot.lane.b32.xlu0 %v254, 32
        %v479 = vpop.permute.xlu0 %478
        %480 = vrot.lane.b32.xlu0 %v256, 32
        %v481 = vpop.permute.xlu0 %480
        %482 = vrot.lane.b32.xlu0 %v259, 32
        %v483 = vpop.permute.xlu0 %482
        %484 = vrot.lane.b32.xlu0 %v261, 32
        %v485 = vpop.permute.xlu0 %484
        %486 = vrot.lane.b32.xlu0 %v264, 32
        %v487 = vpop.permute.xlu0 %486
        %488 = vrot.lane.b32.xlu0 %v266, 32
        %v489 = vpop.permute.xlu0 %488
        %490 = vrot.lane.b32.xlu0 %v269, 32
        %v491 = vpop.permute.xlu0 %490
        %492 = vrot.lane.b32.xlu0 %v271, 32
        %v493 = vpop.permute.xlu0 %492
        %494 = vrot.lane.b32.xlu0 %v274, 32
        %v495 = vpop.permute.xlu0 %494
        %496 = vrot.lane.b32.xlu0 %v276, 32
        %v497 = vpop.permute.xlu0 %496
        %498 = vrot.lane.b32.xlu0 %v467, 32
        %v499 = vpop.permute.xlu0 %498
        %500 = vrot.lane.b32.xlu0 %v469, 32
        %v501 = vpop.permute.xlu0 %500
        %v518 = vrot.slane %v206, 2
        %v519 = vrot.slane %v207, 2
        %v520 = vsel %vm325, %v518, %v519
        %v521 = vrot.slane %v208, 2
        %v522 = vsel %vm325, %v519, %v521
        %523 = vrot.lane.b32.xlu0 %v333, 40
        %v524 = vpop.permute.xlu0 %523
        %525 = vrot.lane.b32.xlu0 %v335, 40
        %v526 = vpop.permute.xlu0 %525
        %527 = vrot.lane.b32.xlu0 %v338, 40
        %v528 = vpop.permute.xlu0 %527
        %529 = vrot.lane.b32.xlu0 %v340, 40
        %v530 = vpop.permute.xlu0 %529
        %531 = vrot.lane.b32.xlu0 %v343, 40
        %v532 = vpop.permute.xlu0 %531
        %533 = vrot.lane.b32.xlu0 %v345, 40
        %v534 = vpop.permute.xlu0 %533
        %535 = vrot.lane.b32.xlu0 %v348, 40
        %v536 = vpop.permute.xlu0 %535
        %537 = vrot.lane.b32.xlu0 %v350, 40
        %v538 = vpop.permute.xlu0 %537
        %539 = vrot.lane.b32.xlu0 %v353, 40
        %v540 = vpop.permute.xlu0 %539
        %541 = vrot.lane.b32.xlu0 %v355, 40
        %v542 = vpop.permute.xlu0 %541
        %543 = vrot.lane.b32.xlu0 %v358, 40
        %v544 = vpop.permute.xlu0 %543
        %545 = vrot.lane.b32.xlu0 %v360, 40
        %v546 = vpop.permute.xlu0 %545
        %547 = vrot.lane.b32.xlu0 %v363, 40
        %v548 = vpop.permute.xlu0 %547
        %549 = vrot.lane.b32.xlu0 %v365, 40
        %v550 = vpop.permute.xlu0 %549
        %551 = vrot.lane.b32.xlu0 %v520, 40
        %v552 = vpop.permute.xlu0 %551
        %553 = vrot.lane.b32.xlu0 %v522, 40
        %v554 = vpop.permute.xlu0 %553
        %573 = vrot.lane.b32.xlu0 %v188, 48
        %v574 = vpop.permute.xlu0 %573
        %575 = vrot.lane.b32.xlu0 %v189, 48
        %v576 = vpop.permute.xlu0 %575
        %577 = vrot.lane.b32.xlu0 %v191, 48
        %v578 = vpop.permute.xlu0 %577
        %579 = vrot.lane.b32.xlu0 %v192, 48
        %v580 = vpop.permute.xlu0 %579
        %581 = vrot.lane.b32.xlu0 %v194, 48
        %v582 = vpop.permute.xlu0 %581
        %583 = vrot.lane.b32.xlu0 %v195, 48
        %v584 = vpop.permute.xlu0 %583
        %585 = vrot.lane.b32.xlu0 %v197, 48
        %v586 = vpop.permute.xlu0 %585
        %587 = vrot.lane.b32.xlu0 %v198, 48
        %v588 = vpop.permute.xlu0 %587
        %589 = vrot.lane.b32.xlu0 %v200, 48
        %v590 = vpop.permute.xlu0 %589
        %591 = vrot.lane.b32.xlu0 %v201, 48
        %v592 = vpop.permute.xlu0 %591
        %593 = vrot.lane.b32.xlu0 %v203, 48
        %v594 = vpop.permute.xlu0 %593
        %595 = vrot.lane.b32.xlu0 %v204, 48
        %v596 = vpop.permute.xlu0 %595
        %597 = vrot.lane.b32.xlu0 %v206, 48
        %v598 = vpop.permute.xlu0 %597
        %599 = vrot.lane.b32.xlu0 %v207, 48
        %v600 = vpop.permute.xlu0 %599
        %601 = vrot.lane.b32.xlu0 %v209, 48
        %v602 = vpop.permute.xlu0 %601
        %603 = vrot.lane.b32.xlu0 %v210, 48
        %v604 = vpop.permute.xlu0 %603
        %v622 = vrot.slane %v209, 1
        %v623 = vrot.slane %v210, 1
        %v624 = vsel %vm236, %v622, %v623
        %v625 = vrot.slane %v211, 1
        %v626 = vsel %vm236, %v623, %v625
        %627 = vrot.lane.b32.xlu0 %v249, 56
        %v628 = vpop.permute.xlu0 %627
        %629 = vrot.lane.b32.xlu0 %v251, 56
        %v630 = vpop.permute.xlu0 %629
        %631 = vrot.lane.b32.xlu0 %v254, 56
        %v632 = vpop.permute.xlu0 %631
        %633 = vrot.lane.b32.xlu0 %v256, 56
        %v634 = vpop.permute.xlu0 %633
        %635 = vrot.lane.b32.xlu0 %v259, 56
        %v636 = vpop.permute.xlu0 %635
        %637 = vrot.lane.b32.xlu0 %v261, 56
        %v638 = vpop.permute.xlu0 %637
        %639 = vrot.lane.b32.xlu0 %v264, 56
        %v640 = vpop.permute.xlu0 %639
        %641 = vrot.lane.b32.xlu0 %v266, 56
        %v642 = vpop.permute.xlu0 %641
        %643 = vrot.lane.b32.xlu0 %v269, 56
        %v644 = vpop.permute.xlu0 %643
        %645 = vrot.lane.b32.xlu0 %v271, 56
        %v646 = vpop.permute.xlu0 %645
        %647 = vrot.lane.b32.xlu0 %v274, 56
        %v648 = vpop.permute.xlu0 %647
        %649 = vrot.lane.b32.xlu0 %v276, 56
        %v650 = vpop.permute.xlu0 %649
        %651 = vrot.lane.b32.xlu0 %v467, 56
        %v652 = vpop.permute.xlu0 %651
        %653 = vrot.lane.b32.xlu0 %v469, 56
        %v654 = vpop.permute.xlu0 %653
        %655 = vrot.lane.b32.xlu0 %v624, 56
        %v656 = vpop.permute.xlu0 %655
        %657 = vrot.lane.b32.xlu0 %v626, 56
        %v658 = vpop.permute.xlu0 %657
        %v675 = vrot.slane %v209, 2
        %v676 = vrot.slane %v210, 2
        %v677 = vsel %vm325, %v675, %v676
        %v678 = vrot.slane %v211, 2
        %v679 = vsel %vm325, %v676, %v678
        %680 = vrot.lane.b32.xlu0 %v338, 64
        %v681 = vpop.permute.xlu0 %680
        %682 = vrot.lane.b32.xlu0 %v340, 64
        %v683 = vpop.permute.xlu0 %682
        %684 = vrot.lane.b32.xlu0 %v343, 64
        %v685 = vpop.permute.xlu0 %684
        %686 = vrot.lane.b32.xlu0 %v345, 64
        %v687 = vpop.permute.xlu0 %686
        %688 = vrot.lane.b32.xlu0 %v348, 64
        %v689 = vpop.permute.xlu0 %688
        %690 = vrot.lane.b32.xlu0 %v350, 64
        %v691 = vpop.permute.xlu0 %690
        %692 = vrot.lane.b32.xlu0 %v353, 64
        %v693 = vpop.permute.xlu0 %692
        %694 = vrot.lane.b32.xlu0 %v355, 64
        %v695 = vpop.permute.xlu0 %694
        %696 = vrot.lane.b32.xlu0 %v358, 64
        %v697 = vpop.permute.xlu0 %696
        %698 = vrot.lane.b32.xlu0 %v360, 64
        %v699 = vpop.permute.xlu0 %698
        %700 = vrot.lane.b32.xlu0 %v363, 64
        %v701 = vpop.permute.xlu0 %700
        %702 = vrot.lane.b32.xlu0 %v365, 64
        %v703 = vpop.permute.xlu0 %702
        %704 = vrot.lane.b32.xlu0 %v520, 64
        %v705 = vpop.permute.xlu0 %704
        %706 = vrot.lane.b32.xlu0 %v522, 64
        %v707 = vpop.permute.xlu0 %706
        %708 = vrot.lane.b32.xlu0 %v677, 64
        %v709 = vpop.permute.xlu0 %708
        %710 = vrot.lane.b32.xlu0 %v679, 64
        %v711 = vpop.permute.xlu0 %710
        %vm728 = vcmask 64512
        %v729 = vsel %vm728, %v182, %v278
        %v730 = vsel %vm728, %v183, %v280
        %v731 = vsel %vm728, %v185, %v282
        %v732 = vsel %vm728, %v186, %v284
        %v733 = vsel %vm728, %v188, %v286
        %v734 = vsel %vm728, %v189, %v288
        %v735 = vsel %vm728, %v191, %v290
        %v736 = vsel %vm728, %v192, %v292
        %v737 = vsel %vm728, %v194, %v294
        %v738 = vsel %vm728, %v195, %v296
        %v739 = vsel %vm728, %v197, %v298
        %v740 = vsel %vm728, %v198, %v300
        %v741 = vsel %vm728, %v200, %v302
        %v742 = vsel %vm728, %v201, %v304
        %v743 = vsel %vm728, %v203, %v306
        %v744 = vsel %vm728, %v204, %v308
        %vm745 = vcmask 130048
        %v746 = vsel %vm745, %v729, %v367
        %v747 = vsel %vm745, %v730, %v369
        %v748 = vsel %vm745, %v731, %v371
        %v749 = vsel %vm745, %v732, %v373
        %v750 = vsel %vm745, %v733, %v375
        %v751 = vsel %vm745, %v734, %v377
        %v752 = vsel %vm745, %v735, %v379
        %v753 = vsel %vm745, %v736, %v381
        %v754 = vsel %vm745, %v737, %v383
        %v755 = vsel %vm745, %v738, %v385
        %v756 = vsel %vm745, %v739, %v387
        %v757 = vsel %vm745, %v740, %v389
        %v758 = vsel %vm745, %v741, %v391
        %v759 = vsel %vm745, %v742, %v393
        %v760 = vsel %vm745, %v743, %v395
        %v761 = vsel %vm745, %v744, %v397
        %vm762 = vcmask 195584
        %v763 = vsel %vm762, %v746, %v417
        %v764 = vsel %vm762, %v747, %v419
        %v765 = vsel %vm762, %v748, %v421
        %v766 = vsel %vm762, %v749, %v423
        %v767 = vsel %vm762, %v750, %v425
        %v768 = vsel %vm762, %v751, %v427
        %v769 = vsel %vm762, %v752, %v429
        %v770 = vsel %vm762, %v753, %v431
        %v771 = vsel %vm762, %v754, %v433
        %v772 = vsel %vm762, %v755, %v435
        %v773 = vsel %vm762, %v756, %v437
        %v774 = vsel %vm762, %v757, %v439
        %v775 = vsel %vm762, %v758, %v441
        %v776 = vsel %vm762, %v759, %v443
        %v777 = vsel %vm762, %v760, %v445
        %v778 = vsel %vm762, %v761, %v447
        %vm779 = vcmask 261120
        %v780 = vsel %vm779, %v763, %v471
        %v781 = vsel %vm779, %v764, %v473
        %v782 = vsel %vm779, %v765, %v475
        %v783 = vsel %vm779, %v766, %v477
        %v784 = vsel %vm779, %v767, %v479
        %v785 = vsel %vm779, %v768, %v481
        %v786 = vsel %vm779, %v769, %v483
        %v787 = vsel %vm779, %v770, %v485
        %v788 = vsel %vm779, %v771, %v487
        %v789 = vsel %vm779, %v772, %v489
        %v790 = vsel %vm779, %v773, %v491
        %v791 = vsel %vm779, %v774, %v493
        %v792 = vsel %vm779, %v775, %v495
        %v793 = vsel %vm779, %v776, %v497
        %v794 = vsel %vm779, %v777, %v499
        %v795 = vsel %vm779, %v778, %v501
        %vm796 = vcmask 326656
        %v797 = vsel %vm796, %v780, %v524
        %v798 = vsel %vm796, %v781, %v526
        %v799 = vsel %vm796, %v782, %v528
        %v800 = vsel %vm796, %v783, %v530
        %v801 = vsel %vm796, %v784, %v532
        %v802 = vsel %vm796, %v785, %v534
        %v803 = vsel %vm796, %v786, %v536
        %v804 = vsel %vm796, %v787, %v538
        %v805 = vsel %vm796, %v788, %v540
        %v806 = vsel %vm796, %v789, %v542
        %v807 = vsel %vm796, %v790, %v544
        %v808 = vsel %vm796, %v791, %v546
        %v809 = vsel %vm796, %v792, %v548
        %v810 = vsel %vm796, %v793, %v550
        %v811 = vsel %vm796, %v794, %v552
        %v812 = vsel %vm796, %v795, %v554
        %vm813 = vcmask 392192
        %v814 = vsel %vm813, %v797, %v574
        %v815 = vsel %vm813, %v798, %v576
        %v816 = vsel %vm813, %v799, %v578
        %v817 = vsel %vm813, %v800, %v580
        %v818 = vsel %vm813, %v801, %v582
        %v819 = vsel %vm813, %v802, %v584
        %v820 = vsel %vm813, %v803, %v586
        %v821 = vsel %vm813, %v804, %v588
        %v822 = vsel %vm813, %v805, %v590
        %v823 = vsel %vm813, %v806, %v592
        %v824 = vsel %vm813, %v807, %v594
        %v825 = vsel %vm813, %v808, %v596
        %v826 = vsel %vm813, %v809, %v598
        %v827 = vsel %vm813, %v810, %v600
        %v828 = vsel %vm813, %v811, %v602
        %v829 = vsel %vm813, %v812, %v604
        %vm830 = vcmask 457728
        %v831 = vsel %vm830, %v814, %v628
        %v832 = vsel %vm830, %v815, %v630
        %v833 = vsel %vm830, %v816, %v632
        %v834 = vsel %vm830, %v817, %v634
        %v835 = vsel %vm830, %v818, %v636
        %v836 = vsel %vm830, %v819, %v638
        %v837 = vsel %vm830, %v820, %v640
        %v838 = vsel %vm830, %v821, %v642
        %v839 = vsel %vm830, %v822, %v644
        %v840 = vsel %vm830, %v823, %v646
        %v841 = vsel %vm830, %v824, %v648
        %v842 = vsel %vm830, %v825, %v650
        %v843 = vsel %vm830, %v826, %v652
        %v844 = vsel %vm830, %v827, %v654
        %v845 = vsel %vm830, %v828, %v656
        %v846 = vsel %vm830, %v829, %v658
        %vm847 = vcmask 523264
        %v848 = vsel %vm847, %v831, %v681
        %v849 = vsel %vm847, %v832, %v683
        %v850 = vsel %vm847, %v833, %v685
        %v851 = vsel %vm847, %v834, %v687
        %v852 = vsel %vm847, %v835, %v689
        %v853 = vsel %vm847, %v836, %v691
        %v854 = vsel %vm847, %v837, %v693
        %v855 = vsel %vm847, %v838, %v695
        %v856 = vsel %vm847, %v839, %v697
        %v857 = vsel %vm847, %v840, %v699
        %v858 = vsel %vm847, %v841, %v701
        %v859 = vsel %vm847, %v842, %v703
        %v860 = vsel %vm847, %v843, %v705
        %v861 = vsel %vm847, %v844, %v707
        %v862 = vsel %vm847, %v845, %v709
        %v863 = vsel %vm847, %v846, %v711
        %v864 = vld [vmem:[%s1] sm:$0xff]
        %v865 = vld [vmem:[%s1 + $0x8] sm:$0xff]
        %v866 = vld [vmem:[%s2] sm:$0xff]
        %v867 = vld [vmem:[%s2 + $0x8] sm:$0xff]
        %869 = vset.pattern.permute.xlu0 0
        %870 = vperm.xlu0 %869, %v866
        %v871 = vpop.permute.xlu0 %870
        %874 = vset.pattern.permute.xlu0 0
        %875 = vperm.xlu0 %874, %v867
        %v876 = vpop.permute.xlu0 %875
        %vm878 = vcmask 588800
        %v880 = vsel %vm878, %v864, 0
        %v883 = vsel %vm878, %v865, 0
        %v886 = vsel %vm878, %v848, 0
        %v889 = vsel %vm878, %v849, 0
        %v892 = vsel %vm878, %v850, 0
        %v895 = vsel %vm878, %v851, 0
        %v898 = vsel %vm878, %v852, 0
        %v901 = vsel %vm878, %v853, 0
        %v904 = vsel %vm878, %v854, 0
        %v907 = vsel %vm878, %v855, 0
        %v910 = vsel %vm878, %v856, 0
        %v913 = vsel %vm878, %v857, 0
        %v916 = vsel %vm878, %v858, 0
        %v919 = vsel %vm878, %v859, 0
        %v922 = vsel %vm878, %v860, 0
        %v925 = vsel %vm878, %v861, 0
        %v928 = vsel %vm878, %v862, 0
        %v931 = vsel %vm878, %v863, 0
        %933 = vmatprep.subr.mxu0 0.0
        %934 = vmatpush1.xpose.msra.mxu0 %v886
        %935 = vmatprep.subr.mxu0 0.0
        %936 = vmatpush1.xpose.msra.mxu0 %v889
        %937 = vmatprep.subr.mxu0 0.0
        %938 = vmatpush1.xpose.msra.mxu0 %v892
        %939 = vmatprep.subr.mxu0 0.0
        %940 = vmatpush1.xpose.msra.mxu0 %v895
        %941 = vmatprep.subr.mxu0 0.0
        %942 = vmatpush1.xpose.msra.mxu0 %v898
        %943 = vmatprep.subr.mxu0 0.0
        %944 = vmatpush1.xpose.msra.mxu0 %v901
        %945 = vmatprep.subr.mxu0 0.0
        %946 = vmatpush1.xpose.msra.mxu0 %v904
        %947 = vmatprep.subr.mxu0 0.0
        %948 = vmatpush1.xpose.msra.mxu0 %v907
        %949 = vmatprep.subr.mxu0 0.0
        %950 = vmatpush1.xpose.msra.mxu0 %v910
        %951 = vmatprep.subr.mxu0 0.0
        %952 = vmatpush1.xpose.msra.mxu0 %v913
        %953 = vmatprep.subr.mxu0 0.0
        %954 = vmatpush1.xpose.msra.mxu0 %v916
        %955 = vmatprep.subr.mxu0 0.0
        %956 = vmatpush1.xpose.msra.mxu0 %v919
        %957 = vmatprep.subr.mxu0 0.0
        %958 = vmatpush1.xpose.msra.mxu0 %v922
        %959 = vmatprep.subr.mxu0 0.0
        %960 = vmatpush1.xpose.msra.mxu0 %v925
        %961 = vmatprep.subr.mxu0 0.0
        %962 = vmatpush1.xpose.msra.mxu0 %v928
        %963 = vmatprep.subr.mxu0 0.0
        %964 = vmatpush1.xpose.msra.mxu0 %v931
        %965 = vmatprep.subr.mxu0 0.0
        %966 = vmatpush1.xpose.msra.mxu0 0.0
        %967 = vmatprep.subr.mxu0 0.0
        %968 = vmatpush1.xpose.msra.mxu0 0.0
        %969 = vmatprep.subr.mxu0 0.0
        %970 = vmatpush1.xpose.msra.mxu0 0.0
        %971 = vmatprep.subr.mxu0 0.0
        %972 = vmatpush1.xpose.msra.mxu0 0.0
        %973 = vmatprep.subr.mxu0 0.0
        %974 = vmatpush1.xpose.msra.mxu0 0.0
        %975 = vmatprep.subr.mxu0 0.0
        %976 = vmatpush1.xpose.msra.mxu0 0.0
        %977 = vmatprep.subr.mxu0 0.0
        %978 = vmatpush1.xpose.msra.mxu0 0.0
        %979 = vmatprep.subr.mxu0 0.0
        %980 = vmatpush1.xpose.msra.mxu0 0.0
        %981 = vmatprep.subr.mxu0 0.0
        %982 = vmatpush1.xpose.msra.mxu0 0.0
        %983 = vmatprep.subr.mxu0 0.0
        %984 = vmatpush1.xpose.msra.mxu0 0.0
        %985 = vmatprep.subr.mxu0 0.0
        %986 = vmatpush1.xpose.msra.mxu0 0.0
        %987 = vmatprep.subr.mxu0 0.0
        %988 = vmatpush1.xpose.msra.mxu0 0.0
        %989 = vmatprep.subr.mxu0 0.0
        %990 = vmatpush1.xpose.msra.mxu0 0.0
        %991 = vmatprep.subr.mxu0 0.0
        %992 = vmatpush1.xpose.msra.mxu0 0.0
        %993 = vmatprep.subr.mxu0 0.0
        %994 = vmatpush1.xpose.msra.mxu0 0.0
        %995 = vmatprep.subr.mxu0 0.0
        %996 = vmatpush1.xpose.msra.mxu0 0.0
        %997 = vmatprep.mubr.f32.mxu0 0.0
        %998 = vmatmul.mubr.f32.gmra.mrb[0].mxu0 %v880
        %v999 = vpop.f32.mrb[0].mxu0
        %v1000 = vadd.f32 %v871, %v999
        %v1001 = vpop.f32.mrb[0].mxu0
        %1002 = vmatprep.mubr.f32.mxu0 0.0
        %1003 = vmatmul.mubr.f32.gmra.mrb[0].mxu0 %v883
        %v1004 = vpop.f32.mrb[0].mxu0
        %v1005 = vadd.f32 %v876, %v1004
        %v1006 = vpop.f32.mrb[0].mxu0
        %1007 = vdwg.mxu0
        %1008 = vst [vmem:[%s173] sm:$0xff] %v1000
        %1009 = vst [vmem:[%s173 + $0x8] sm:$0xff] %v1005
        %s1010 = sand.u32 %s104, 1
        %s1011 = sand.u32 %s104, 1
        %s1012 = smul.addr %s1011, 16
        %s1013 = scalar_lea.vmem [#allocation2], %s1012
        // Predicated region
        $region33: #{depthwise_separable_conv.1} parent=31 // pred_check
          %p1014 = pneg %p114
        $region34: #{depthwise_separable_conv.1} parent=31 // pred_check_branch
          %1016 = sbr.rel (%p1014) target = $region36
        $region35: #{depthwise_separable_conv.1} parent=31 // pred_region
          %s1017 = smul.addr %s18, 4
          %s1018 = sadd.s32 %s19, %s1017
          %s1019 = smul.addr %s1018, 8
          %s1020 = scalar_lea.vmem %s3, %s1019
          // Predicated region
          $region37: #{depthwise_separable_conv.1} parent=35 // pred_check
            _
          $region38: #{depthwise_separable_conv.1} parent=35 // pred_check_branch
            %1022 = sbr.rel (0) target = $region40
          $region39: #{depthwise_separable_conv.1} parent=35 // pred_region
            // Predicated region
            $region41: #{depthwise_separable_conv.1} parent=39 // pred_check
              _
            $region42: #{depthwise_separable_conv.1} parent=39 // pred_check_branch
              %1024 = sbr.rel (0) target = $region44
            $region43: #{depthwise_separable_conv.1} parent=39 // pred_region
              // Predicated region
              $region56: #{depthwise_separable_conv.1} parent=43 // pred_check
                _
              $region57: #{depthwise_separable_conv.1} parent=43 // pred_check_branch
                %1041 = sbr.rel (0) target = $region59
              $region58: #{depthwise_separable_conv.1} parent=43 // pred_region
                loop: start=0, step=1, limit=1
                $region60: #{depthwise_separable_conv.1} parent=58 // loop_pre_header
                  _
                $region61: #{depthwise_separable_conv.1} parent=58 // loop_header
                  %s1043 = sphi 0, %s1047
                  %p1044 = scmp.ge.s32.totalorder %s1043, 1
                  %s1048 = sphi %s1013, %s1013
                  %s1049 = sphi %s1020, %s1020
                $region62: #{depthwise_separable_conv.1} parent=58 // loop_header_branch
                  %1046 = sbr.rel (%p1044) target = $region66
                $region63: #{depthwise_separable_conv.1} parent=58 // loop_body
                  %v1050 = vld [vmem:[%s1048] sm:$0xff]
                  %1051 = vst [vmem:[%s1049] sm:$0xff] %v1050
                  %v1052 = vld [vmem:[%s1048 + $0x8] sm:$0xff]
                  %1053 = vst [vmem:[%s1049 + $0x10] sm:$0xff] %v1052
                $region64: #{depthwise_separable_conv.1} parent=58 // loop_footer
                  %s1047 = sadd.s32 1, %s1043
                $region65: #{depthwise_separable_conv.1} parent=58 // loop_footer_branch
                  %1042 = sbr.rel target = $region61
                $region66: #{depthwise_separable_conv.1} parent=58 // loop_exit
                  _
              $region59: #{depthwise_separable_conv.1} parent=43 // pred_fallthru
                _
              // Predicated region
              $region67: #{depthwise_separable_conv.1} parent=43 // pred_check
                _
              $region68: #{depthwise_separable_conv.1} parent=43 // pred_check_branch
                %1055 = sbr.rel target = $region70
              $region69: #{depthwise_separable_conv.1} parent=43 // pred_region
                _
              $region70: #{depthwise_separable_conv.1} parent=43 // pred_fallthru
                _
            $region44: #{depthwise_separable_conv.1} parent=39 // pred_fallthru
              _
            // Predicated region
            $region45: #{depthwise_separable_conv.1} parent=39 // pred_check
              _
            $region46: #{depthwise_separable_conv.1} parent=39 // pred_check_branch
              %1026 = sbr.rel target = $region48
            $region47: #{depthwise_separable_conv.1} parent=39 // pred_region
              loop: start=0, step=1, limit=1
              $region49: #{depthwise_separable_conv.1} parent=47 // loop_pre_header
                _
              $region50: #{depthwise_separable_conv.1} parent=47 // loop_header
                %s1029 = sphi 0, %s1033
                %p1030 = scmp.ge.s32.totalorder %s1029, 1
                %s1034 = sphi %s1013, %s1013
                %s1035 = sphi %s1020, %s1020
              $region51: #{depthwise_separable_conv.1} parent=47 // loop_header_branch
                %1032 = sbr.rel (%p1030) target = $region55
              $region52: #{depthwise_separable_conv.1} parent=47 // loop_body
                %v1036 = vld [vmem:[%s1034] sm:$0xff]
                %1037 = vst [vmem:[%s1035] sm:$0xff] %v1036
                %v1038 = vld [vmem:[%s1034 + $0x8] sm:$0xff]
                %1039 = vst [vmem:[%s1035 + $0x10] sm:$0xff] %v1038
              $region53: #{depthwise_separable_conv.1} parent=47 // loop_footer
                %s1033 = sadd.s32 1, %s1029
              $region54: #{depthwise_separable_conv.1} parent=47 // loop_footer_branch
                %1028 = sbr.rel target = $region50
              $region55: #{depthwise_separable_conv.1} parent=47 // loop_exit
                _
            $region48: #{depthwise_separable_conv.1} parent=39 // pred_fallthru
              _
          $region40: #{depthwise_separable_conv.1} parent=35 // pred_fallthru
            _
          %1056 = vnop
        $region36: #{depthwise_separable_conv.1} parent=31 // pred_fallthru
          _
      $region32: #{depthwise_separable_conv.1} parent=5 // pred_fallthru
        _
      %p1057 = scmp.le.s32.totalorder 2, %s9
      // Predicated region
      $region71: #{depthwise_separable_conv.1} parent=5 // pred_check
        %p1058 = pneg %p1057
      $region72: #{depthwise_separable_conv.1} parent=5 // pred_check_branch
        %1060 = sbr.rel (%p1058) target = $region74
      $region73: #{depthwise_separable_conv.1} parent=5 // pred_region
        %s1061 = ssub.s32 %s9, 2
        // Predicated region
        $region75: #{depthwise_separable_conv.1} parent=73 // pred_check
          %p1062 = pneg %p120
        $region76: #{depthwise_separable_conv.1} parent=73 // pred_check_branch
          %1064 = sbr.rel (%p1062) target = $region78
        $region77: #{depthwise_separable_conv.1} parent=73 // pred_region
          %s1065 = sand.u32 %s105, 1
          %s1066 = sand.u32 %s105, 1
          %s1067 = smul.addr %s1066, 16
          %s1068 = scalar_lea.vmem [#allocation2], %s1067
        $region78: #{depthwise_separable_conv.1} parent=73 // pred_fallthru
          _
      $region74: #{depthwise_separable_conv.1} parent=5 // pred_fallthru
        _
    $region6: #{depthwise_separable_conv.1} parent=1 // loop_footer
      %s13 = sadd.s32 1, %s9
    $region7: #{depthwise_separable_conv.1} parent=1 // loop_footer_branch
      %8 = sbr.rel target = $region3
    $region8: #{depthwise_separable_conv.1} parent=1 // loop_exit
      _

</llo_original>
